<compile_context>
chip_gen: v5e
topology: v5e:2x2
jax: 0.10.0
libtpu: 0.0.40
codegen_flags: <defaults>
</compile_context>

<pallas_src>
import functools

import jax
import jax.numpy as jnp
from jax.experimental import pallas as pl
from jax.experimental.pallas import tpu as pltpu


_LANES = 128


def _round_up(x, m):
    return (x + m - 1) // m * m


def _cdiv(a, b):
    return -(-a // b)


def _tpu_caps():
    """Best-effort (VMEM capacity bytes, TensorCores per chip) with safe fallbacks."""
    vmem_cap = 64 * 1024 * 1024          # conservative default (v7x per-core VMEM)
    ncores = 1
    try:
        info_fn = getattr(pltpu, "get_tpu_info", None)
        if info_fn is not None:
            vmem_cap = int(getattr(info_fn(), "vmem_capacity_bytes", vmem_cap)) or vmem_cap
    except Exception:
        pass
    try:
        kind = jax.devices()[0].device_kind.lower()
        if "v7" in kind or "7x" in kind:
            ncores = 2
    except Exception:
        pass
    if ncores == 2:
        # v7x exposes 64 MiB VMEM per TensorCore regardless of what the chip
        # level query reports.
        vmem_cap = min(vmem_cap, 64 * 1024 * 1024)
    return vmem_cap, ncores


def _cut_balance_kernel(a_ref, y_ref, gamma_ref, diag_ref, *,
                        tm, tk, n, tiles_per_core, ones_col,
                        mask_rows, mask_cols):
    """One (core, row-tile, K-tile) step: accumulate per-column partials.

    a_ref:     (tm, tk)        streamed tile of A (bf16 or f32), tails are garbage
    y_ref:     (n_pad_y, Gp)   resident Y_aug = [Y | ones | 0...] (same dtype as A)
    gamma_ref: (1, 1, Gp) f32  += sum_n Y[n,i] * D[n]           (per core)
    diag_ref:  (1, 1, Gp) f32  += sum_n Y[n,i] * (A @ Y)[n,i]   (per core)
    """
    c = pl.program_id(0)
    t = pl.program_id(1)
    k = pl.program_id(2)

    @pl.when(jnp.logical_and(t == 0, k == 0))
    def _():
        gamma_ref[...] = jnp.zeros_like(gamma_ref)
        diag_ref[...] = jnp.zeros_like(diag_ref)

    # Unclamped offsets of this tile (phantom row tiles -> row0 >= n, fully masked).
    row0 = pl.multiple_of((c * tiles_per_core + t) * tm, tm)
    col0 = pl.multiple_of(k * tk, tk)

    a = a_ref[...]                                          # (tm, tk)
    if mask_cols:
        # Zero OOB columns of the (partial) tail K tile *before* the MXU pass:
        # stale-VMEM NaN/Inf garbage would otherwise poison the accumulation
        # even though the matching Y rows are zero.
        cmask = jax.lax.broadcasted_iota(jnp.int32, (1, tk), 1) < (n - col0)
        a = jnp.where(cmask, a, jnp.zeros_like(a))

    # Single MXU pass over the tile.  Lane `ones_col` of the product is the
    # partial row-sum (degree) of A for these rows over this K chunk.
    y_k = y_ref[pl.ds(col0, tk), :]                         # (tk, Gp), same dtype as A
    ay = jnp.dot(a, y_k, preferred_element_type=jnp.float32)  # (tm, Gp) f32

    if mask_rows:
        # Rows >= n (row tail / phantom core tiles): zero their contribution.
        # Done on the small (tm, Gp) product, not the big (tm, tk) A tile.
        rmask = jax.lax.broadcasted_iota(jnp.int32, (tm, 1), 0) < (n - row0)
        ay = jnp.where(rmask, ay, 0.0)

    # Rows of Y matching this row tile (Y stays resident; upcast only the slice).
    y_t = y_ref[pl.ds(row0, tm), :].astype(jnp.float32)     # (tm, Gp)
    d_col = ay[:, ones_col:ones_col + 1]                    # (tm, 1) partial degrees

    gamma_ref[...] += jnp.sum(y_t * d_col, axis=0, keepdims=True)
    diag_ref[...] += jnp.sum(y_t * ay, axis=0, keepdims=True)


def cut_balance_loss(adj, Y, *, a_dtype=jnp.bfloat16):
    """adj: (n, n), Y: (n, g) -> scalar f32 loss (matches the PyTorch module).

    a_dtype controls the HBM streaming dtype of the adjacency (default bf16:
    half the dominant HBM stream, native MXU path; f32 accumulation).  If adj
    is already stored in a_dtype no pre-pass copy is made at all — for repeated
    use (fixed adj, varying Y) cast adj to bf16 once outside this function.
    Pass a_dtype=jnp.float32 to keep the module's f32 streaming semantics.
    """
    n, g = Y.shape
    assert adj.shape == (n, n)

    vmem_cap, ncores = _tpu_caps()
    budget = int(vmem_cap * 0.65)

    g_pad = _round_up(g + 1, _LANES)                 # [Y | ones | zero pad]
    a_dtype = jnp.dtype(a_dtype)
    a_itemsize = a_dtype.itemsize

    # Row tile: big enough to amortize per-step overhead, never more than one
    # 128-padded copy of n.
    tm = min(512, _round_up(n, _LANES))
    row_tiles = _cdiv(n, tm)
    row_tiles_total = _round_up(row_tiles, ncores)   # phantom tiles are masked
    tiles_per_core = row_tiles_total // ncores

    # K (column) tile: largest multiple of 128 keeping double-buffered A tile +
    # resident Y_aug + f32 temporaries inside the VMEM budget.  The K axis
    # decouples VMEM from n, so tm stays 512 for any n.
    tk = _LANES
    need = 0
    for cand in (8192, 4096, 2048, 1024, 512, 256, 128):
        if cand > _round_up(n, _LANES) and cand != _LANES:
            continue
        k_tiles = _cdiv(n, cand)
        n_pad_y = max(row_tiles_total * tm, k_tiles * cand)
        need = (2 * tm * cand * a_itemsize           # double-buffered A tile
                + 2 * n_pad_y * g_pad * a_itemsize   # resident Y_aug (conservative 2x)
                + 4 * tm * g_pad * 4                 # ay / y_t / reduce temporaries
                + 4 * 2 * g_pad * 4)                 # accumulator output blocks
        if need <= budget or cand == _LANES:
            tk = cand
            break
    k_tiles = _cdiv(n, tk)
    n_pad_y = max(row_tiles_total * tm, k_tiles * tk)
    # TODO(synk): for extreme n where 2*n*g_pad*itemsize alone exceeds VMEM,
    # Y_aug itself must be row-tiled (or single-buffered via a manual copy).

    vmem_limit = max(need + (8 << 20), 32 << 20)
    vmem_limit = min(vmem_limit, int(vmem_cap * 0.9))

    # A streams as-is (cast only if the dtype differs; no padded copy).
    a_in = adj if adj.dtype == a_dtype else adj.astype(a_dtype)

    # Lane-dense Y_aug = [Y | ones | 0...]; the ones column folds D = A @ 1
    # into the single MXU pass.  Rows >= n are zero.  Y is tiny vs A.
    y_aug = jnp.zeros((n_pad_y, g_pad), a_dtype)
    y_aug = y_aug.at[:n, :g].set(Y.astype(a_dtype))
    y_aug = y_aug.at[:n, g].set(1.0)

    mask_rows = (row_tiles_total * tm != n)
    mask_cols = (k_tiles * tk != n)

    kernel = functools.partial(
        _cut_balance_kernel, tm=tm, tk=tk, n=n,
        tiles_per_core=tiles_per_core, ones_col=g,
        mask_rows=mask_rows, mask_cols=mask_cols)

    if row_tiles_total == row_tiles:
        a_index_map = lambda c, t, k: (c * tiles_per_core + t, k)
    else:
        # Clamp phantom row tiles (from rounding row_tiles up to ncores) onto
        # the last valid tile; the in-kernel row mask zeroes their contribution.
        a_index_map = lambda c, t, k: (
            jnp.minimum(c * tiles_per_core + t, row_tiles - 1), k)

    acc_shape = jax.ShapeDtypeStruct((ncores, 1, g_pad), jnp.float32)
    acc_spec = pl.BlockSpec((1, 1, g_pad), lambda c, t, k: (c, 0, 0))

    # TODO(synk): if xprof shows the leading "parallel" axis serializing on
    # v7x's two TensorCores, switch it to pltpu.CORE_PARALLEL / pl.core_map.
    gamma_p, diag_p = pl.pallas_call(
        kernel,
        out_shape=(acc_shape, acc_shape),
        grid_spec=pltpu.PrefetchScalarGridSpec(
            num_scalar_prefetch=0,
            grid=(ncores, tiles_per_core, k_tiles),
            in_specs=[
                # Streamed (tm, tk) tiles of A: double-buffered DMA overlaps compute.
                pl.BlockSpec((tm, tk), a_index_map),
                # Y_aug resident (constant block index -> single DMA, reused).
                pl.BlockSpec((n_pad_y, g_pad), lambda c, t, k: (0, 0)),
            ],
            out_specs=(acc_spec, acc_spec),
        ),
        compiler_params=pltpu.CompilerParams(
            dimension_semantics=("parallel", "arbitrary", "arbitrary"),
            vmem_limit_bytes=int(vmem_limit),
        ),
    )(a_in, y_aug)

    # O(g) epilogue in plain JAX: combine per-core partials, drop padding lanes.
    gamma = jnp.sum(gamma_p, axis=(0, 1))[:g]
    diag = jnp.sum(diag_p, axis=(0, 1))[:g]
    colsum = jnp.sum(Y.astype(jnp.float32), axis=0)      # exact f32, O(n*g)

    # NOTE: like the PyTorch reference, divides by Gamma_i with no guard;
    # Gamma_i == 0 (empty weighted cluster) yields inf/nan in both.
    cut_loss = jnp.sum((gamma - diag) / gamma)
    balance_loss = jnp.sum((colsum - n / g) ** 2)
    return cut_loss + balance_loss


def _reference(adj, Y):
    # Pure-JAX transcription of the PyTorch forward (for sanity checking).
    n, g = Y.shape
    D = jnp.sum(adj, axis=1)
    Gamma = Y.T @ D[:, None]
    cut_loss = 0.0
    for i in range(g):
        e_cut = Y[:, i][:, None] @ (1.0 - Y[:, i])[None, :]
        e_cut = e_cut * adj
        cut_loss = cut_loss + e_cut.sum() / Gamma[i, 0]
    balance_loss = jnp.sum((jnp.sum(Y, axis=0) - n / g) ** 2)
    return cut_loss + balance_loss


if __name__ == "__main__":
    key = jax.random.PRNGKey(0)

    # Case 1: small shapes consistent with the module (n=16 nodes, g=4 groups),
    # f32 streaming path (exact module semantics).
    n, g = 16, 4
    k_a, k_y, key = jax.random.split(key, 3)
    A_raw = jax.random.uniform(k_a, (n, n), dtype=jnp.float32)
    adj = (A_raw + A_raw.T) * 0.5                      # symmetric, non-negative
    Y = jax.nn.softmax(jax.random.normal(k_y, (n, g), dtype=jnp.float32), axis=-1)

    loss = jax.block_until_ready(cut_balance_loss(adj, Y, a_dtype=jnp.float32))
    ref = _reference(adj, Y)
    assert jnp.allclose(loss, ref, rtol=5e-4, atol=1e-3), (loss, ref)

    # Case 2: non-tile-aligned size exercising padding-free tail masking on both
    # the row and K axes, multi-tile reduction, and the default bf16 stream.
    n2, g2 = 600, 5
    k_a2, k_y2, key = jax.random.split(key, 3)
    A2_raw = jax.random.uniform(k_a2, (n2, n2), dtype=jnp.float32)
    adj2 = (A2_raw + A2_raw.T) * 0.5
    Y2 = jax.nn.softmax(jax.random.normal(k_y2, (n2, g2), dtype=jnp.float32), axis=-1)

    loss2 = jax.block_until_ready(cut_balance_loss(adj2, Y2))    # bf16 default
    ref2 = _reference(adj2, Y2)
    assert jnp.allclose(loss2, ref2, rtol=5e-3, atol=5e-2), (loss2, ref2)

    print("KERNEL_OK")
</pallas_src>

<mosaic_0001>
module attributes {stable_mosaic.version = 11 : i64} {
  func.func @_cut_balance_kernel(%arg0: i32, %arg1: i32, %arg2: i32, %arg3: memref<128x128xf32, #tpu.memory_space<vmem>>, %arg4: memref<128x128xf32, #tpu.memory_space<vmem>>, %arg5: memref<1x1x128xf32, #tpu.memory_space<vmem>>, %arg6: memref<1x1x128xf32, #tpu.memory_space<vmem>>) attributes {dimension_semantics = [#tpu.dimension_semantics<parallel>, #tpu.dimension_semantics<arbitrary>, #tpu.dimension_semantics<arbitrary>], iteration_bounds = array<i64: 1, 1, 1>, scalar_prefetch = 0 : i64, scratch_operands = 0 : i64, tpu.core_type = #tpu.core_type<tc>, window_params = [{transform_indices = @transform_0, window_bounds = array<i64: 128, 128>}, {pipeline_mode = #tpu.pipeline_mode<synchronous>, transform_indices = @transform_1, window_bounds = array<i64: 128, 128>}, {transform_indices = @transform_2, window_bounds = array<i64: 1, 1, 128>}, {transform_indices = @transform_3, window_bounds = array<i64: 1, 1, 128>}]} {
    %c0_i32 = arith.constant 0 : i32
    %0 = arith.cmpi eq, %arg1, %c0_i32 : i32
    %c0_i32_0 = arith.constant 0 : i32
    %1 = arith.cmpi eq, %arg2, %c0_i32_0 : i32
    %2 = arith.andi %0, %1 : i1
    %3 = arith.extui %2 : i1 to i32
    %c0_i32_1 = arith.constant 0 : i32
    %4 = arith.cmpi ne, %3, %c0_i32_1 : i32
    scf.if %4 {
      %cst_23 = arith.constant 0.000000e+00 : f32
      %49 = vector.broadcast %cst_23 : f32 to vector<1x1x128xf32>
      %c0_24 = arith.constant 0 : index
      %c0_25 = arith.constant 0 : index
      %c0_26 = arith.constant 0 : index
      %50 = vector.load %arg5[%c0_24, %c0_25, %c0_26] : memref<1x1x128xf32, #tpu.memory_space<vmem>>, vector<1x1x128xf32>
      tpu.vector_store %arg5[%c0_24, %c0_25, %c0_26], %49 {strides = array<i32>} : memref<1x1x128xf32, #tpu.memory_space<vmem>>, vector<1x1x128xf32>,
      %cst_27 = arith.constant 0.000000e+00 : f32
      %51 = vector.broadcast %cst_27 : f32 to vector<1x1x128xf32>
      %c0_28 = arith.constant 0 : index
      %c0_29 = arith.constant 0 : index
      %c0_30 = arith.constant 0 : index
      %52 = vector.load %arg6[%c0_28, %c0_29, %c0_30] : memref<1x1x128xf32, #tpu.memory_space<vmem>>, vector<1x1x128xf32>
      tpu.vector_store %arg6[%c0_28, %c0_29, %c0_30], %51 {strides = array<i32>} : memref<1x1x128xf32, #tpu.memory_space<vmem>>, vector<1x1x128xf32>,
    } else {
    }
    %c1_i32 = arith.constant 1 : i32
    %5 = arith.muli %arg0, %c1_i32 : i32
    %6 = arith.addi %5, %arg1 : i32
    %c128_i32 = arith.constant 128 : i32
    %7 = arith.muli %6, %c128_i32 : i32
    %8 = tpu.assume_multiple %7, 128 : i32
    %c128_i32_2 = arith.constant 128 : i32
    %9 = arith.muli %arg2, %c128_i32_2 : i32
    %10 = tpu.assume_multiple %9, 128 : i32
    %c0 = arith.constant 0 : index
    %c0_3 = arith.constant 0 : index
    %11 = vector.load %arg3[%c0, %c0_3] : memref<128x128xf32, #tpu.memory_space<vmem>>, vector<128x128xf32>
    %12 = tpu.iota {dimensions = array<i32: 1>} : vector<1x128xi32>
    %c16_i32 = arith.constant 16 : i32
    %13 = arith.subi %c16_i32, %10 : i32
    %14 = vector.broadcast %13 : i32 to vector<1x128xi32>
    %15 = arith.cmpi slt, %12, %14 : vector<1x128xi32>
    %cst = arith.constant 0.000000e+00 : f32
    %16 = vector.broadcast %cst : f32 to vector<128x128xf32>
    %17 = vector.shape_cast %15 : vector<1x128xi1> to vector<1x128xi1>
    %18 = vector.broadcast %17 : vector<1x128xi1> to vector<128x128xi1>
    %19 = arith.select %18, %11, %16 : vector<128x128xi1>, vector<128x128xf32>
    %20 = arith.index_cast %10 : i32 to index
    %c0_4 = arith.constant 0 : index
    %21 = vector.load %arg4[%20, %c0_4] : memref<128x128xf32, #tpu.memory_space<vmem>>, vector<128x128xf32>
    %cst_5 = arith.constant dense<0.000000e+00> : vector<128x128xf32>
    %22 = tpu.matmul %19, %21, %cst_5 {dimension_numbers = #tpu.dot_dimension_numbers<[1], [0], [0], [1], [0, 0, 1, 1], [], []>} : vector<128x128xf32>, vector<128x128xf32>, vector<128x128xf32> -> vector<128x128xf32>
    %23 = tpu.iota {dimensions = array<i32: 0>} : vector<128x1xi32>
    %c16_i32_6 = arith.constant 16 : i32
    %24 = arith.subi %c16_i32_6, %8 : i32
    %25 = vector.broadcast %24 : i32 to vector<128x1xi32>
    %26 = arith.cmpi slt, %23, %25 : vector<128x1xi32>
    %cst_7 = arith.constant 0.000000e+00 : f32
    %27 = vector.shape_cast %26 : vector<128x1xi1> to vector<128x1xi1>
    %28 = vector.broadcast %27 : vector<128x1xi1> to vector<128x128xi1>
    %29 = vector.broadcast %cst_7 : f32 to vector<128x128xf32>
    %30 = arith.select %28, %22, %29 : vector<128x128xi1>, vector<128x128xf32>
    %31 = arith.index_cast %8 : i32 to index
    %c0_8 = arith.constant 0 : index
    %32 = vector.load %arg4[%31, %c0_8] : memref<128x128xf32, #tpu.memory_space<vmem>>, vector<128x128xf32>
    %33 = vector.extract_strided_slice %30 {offsets = [0, 4], sizes = [128, 1], strides = [1, 1]} : vector<128x128xf32> to vector<128x1xf32>
    %c0_9 = arith.constant 0 : index
    %c0_10 = arith.constant 0 : index
    %c0_11 = arith.constant 0 : index
    %34 = vector.load %arg5[%c0_9, %c0_10, %c0_11] : memref<1x1x128xf32, #tpu.memory_space<vmem>>, vector<1x1x128xf32>
    %35 = vector.broadcast %33 : vector<128x1xf32> to vector<128x128xf32>
    %36 = arith.mulf %32, %35 : vector<128x128xf32>
    %cst_12 = arith.constant dense<0.000000e+00> : vector<128xf32>
    %37 = vector.multi_reduction <add>, %36, %cst_12 [0] : vector<128x128xf32> to vector<128xf32>
    %38 = vector.shape_cast %37 : vector<128xf32> to vector<1x128xf32>
    %39 = vector.shape_cast %38 : vector<1x128xf32> to vector<1x1x128xf32>
    %40 = arith.addf %34, %39 : vector<1x1x128xf32>
    %c0_13 = arith.constant 0 : index
    %c0_14 = arith.constant 0 : index
    %c0_15 = arith.constant 0 : index
    %41 = vector.load %arg5[%c0_13, %c0_14, %c0_15] : memref<1x1x128xf32, #tpu.memory_space<vmem>>, vector<1x1x128xf32>
    tpu.vector_store %arg5[%c0_13, %c0_14, %c0_15], %40 {strides = array<i32>} : memref<1x1x128xf32, #tpu.memory_space<vmem>>, vector<1x1x128xf32>,
    %c0_16 = arith.constant 0 : index
    %c0_17 = arith.constant 0 : index
    %c0_18 = arith.constant 0 : index
    %42 = vector.load %arg6[%c0_16, %c0_17, %c0_18] : memref<1x1x128xf32, #tpu.memory_space<vmem>>, vector<1x1x128xf32>
    %43 = arith.mulf %32, %30 : vector<128x128xf32>
    %cst_19 = arith.constant dense<0.000000e+00> : vector<128xf32>
    %44 = vector.multi_reduction <add>, %43, %cst_19 [0] : vector<128x128xf32> to vector<128xf32>
    %45 = vector.shape_cast %44 : vector<128xf32> to vector<1x128xf32>
    %46 = vector.shape_cast %45 : vector<1x128xf32> to vector<1x1x128xf32>
    %47 = arith.addf %42, %46 : vector<1x1x128xf32>
    %c0_20 = arith.constant 0 : index
    %c0_21 = arith.constant 0 : index
    %c0_22 = arith.constant 0 : index
    %48 = vector.load %arg6[%c0_20, %c0_21, %c0_22] : memref<1x1x128xf32, #tpu.memory_space<vmem>>, vector<1x1x128xf32>
    tpu.vector_store %arg6[%c0_20, %c0_21, %c0_22], %47 {strides = array<i32>} : memref<1x1x128xf32, #tpu.memory_space<vmem>>, vector<1x1x128xf32>,
    return
  }
  func.func @transform_0(%arg0: i32, %arg1: i32, %arg2: i32) -> (i32, i32) {
    %c1_i32 = arith.constant 1 : i32
    %0 = arith.muli %arg0, %c1_i32 : i32
    %1 = arith.addi %0, %arg1 : i32
    %c0_i32 = arith.constant 0 : i32
    return %1, %arg2 : i32, i32
  }
  func.func @transform_1(%arg0: i32, %arg1: i32, %arg2: i32) -> (i32, i32) {
    %c0_i32 = arith.constant 0 : i32
    %c0_i32_0 = arith.constant 0 : i32
    %c0_i32_1 = arith.constant 0 : i32
    return %c0_i32, %c0_i32_0 : i32, i32
  }
  func.func @transform_2(%arg0: i32, %arg1: i32, %arg2: i32) -> (i32, i32, i32) {
    %c0_i32 = arith.constant 0 : i32
    %c0_i32_0 = arith.constant 0 : i32
    %c0_i32_1 = arith.constant 0 : i32
    return %arg0, %c0_i32, %c0_i32_0 : i32, i32, i32
  }
  func.func @transform_3(%arg0: i32, %arg1: i32, %arg2: i32) -> (i32, i32, i32) {
    %c0_i32 = arith.constant 0 : i32
    %c0_i32_0 = arith.constant 0 : i32
    %c0_i32_1 = arith.constant 0 : i32
    return %arg0, %c0_i32, %c0_i32_0 : i32, i32, i32
  }
}

</mosaic_0001>

<llo_original>
// kernel: tpu_custom_call.1
$region0: #{tpu_custom_call.1}
  #allocation0 [shape = 'u32[]', space=smem, size = 0x4, offset = 0x4, fixed_abs, tag = 'smem constant byte address 0x4 - core index']
  #allocation1 [shape = 'u32[72,128]{1,0:T(1,128)}', space=vmem, size = 0x9000, scoped, tag = 'internal scratch']
  %s0 = inlined_call_operand.hbm [shape: f32[16,16], index: 0, kind: input, shape index: {}]
  %s1 = inlined_call_operand.hbm [shape: f32[128,128], index: 1, kind: input, shape index: {}]
  %s2 = inlined_call_operand.hbm [shape: f32[1,1,128], index: 2, kind: output, shape index: {0}]
  %s3 = inlined_call_operand.hbm [shape: f32[1,1,128], index: 3, kind: output, shape index: {1}]
  %4 = xla_tuple %s2, %s3
  %s5 = sld [smem:[#allocation0]]
  $region38: #{tpu_custom_call.1} parent=0
    _
  %s7 = ssub.s32 1, %s5
  %s8 = scalar_select 0, %s7, %s5
  $region1: #{tpu_custom_call.1} parent=0
    #allocation2 [shape = 'u8[65536]{0}', space=vmem, size = 0x10000, scoped, tag = 'input window, operand 0, single buffered']
    #allocation3 [shape = 's32[1]{0}', space=sflag, size = 0x4, scoped, tag = 'scoped memory for tpu_custom_call.1']
    #allocation4 [shape = 's32[1]{0}', space=sflag, size = 0x4, scoped, tag = 'scoped memory for tpu_custom_call.1']
    #allocation5 [shape = 'u8[65536]{0}', space=vmem, size = 0x10000, scoped, tag = 'input window, operand 1, single buffered']
    #allocation6 [shape = 's32[1]{0}', space=sflag, size = 0x4, scoped, tag = 'scoped memory for tpu_custom_call.1']
    #allocation7 [shape = 'u8[512]{0}', space=vmem, size = 0x400, scoped, tag = 'output window, operand 0, single buffered']
    #allocation8 [shape = 'u8[512]{0}', space=vmem, size = 0x400, scoped, tag = 'output window, operand 1, single buffered']
    #allocation9 [shape = 's32[1]{0}', space=sflag, size = 0x4, scoped, tag = 'scoped memory for tpu_custom_call.1']
    %9 = vsyncpa [#allocation3], 0
    %10 = vsyncpa [#allocation6], 0
    %11 = vsyncpa [#allocation4], 0
    %12 = vsyncpa [#allocation9], 0
    // Predicated region
    $region2: #{tpu_custom_call.1} parent=1 // pred_check
      _
    $region3: #{tpu_custom_call.1} parent=1 // pred_check_branch
      %14 = sbr.rel (0) target = $region5
    $region4: #{tpu_custom_call.1} parent=1 // pred_region
      %s15 = sadd.s32 0, 0
      %s16 = smul.u32 16, %s15
      %s17 = ssub.s32 2, %s16
      %s18 = smul.u32 8, %s17
      %s19 = ssub.s32 128, %s18
      %s20 = sshll.u32 %s19, 4
      %21 = vsyncadd [#allocation3], %s20
      %p22 = scmp.ne.s32.totalorder 0, %s18
      %s23 = smul.addr %s16, 8
      %s24 = scalar_lea.hbm %s0, %s23
      %s25 = smul.u32 8, %s17
      %s26 = sshll.u32 %s24, 4
      %s27 = int_to_ptr.hbm [resolvable:$true] %s26
      %s28 = sshll.u32 [#allocation2], 4
      %s29 = int_to_ptr.vmem [resolvable:$true] %s28
      %s30 = sshll.u32 %s25, 4
      %34 = dma.hbm_to_vmem [thread:$0]  (%p22), %s27, %s30, %s29, [#allocation3], 128, 128, 8
    $region5: #{tpu_custom_call.1} parent=1 // pred_fallthru
      _
    // Predicated region
    $region6: #{tpu_custom_call.1} parent=1 // pred_check
      _
    $region7: #{tpu_custom_call.1} parent=1 // pred_check_branch
      %36 = sbr.rel (0) target = $region9
    $region8: #{tpu_custom_call.1} parent=1 // pred_region
      %38 = vsyncadd [#allocation6], 0
      %s39 = sshll.u32 %s1, 4
      %s40 = int_to_ptr.hbm [resolvable:$true] %s39
      %s41 = sshll.u32 [#allocation5], 4
      %s42 = int_to_ptr.vmem [resolvable:$true] %s41
      %47 = dma.hbm_to_vmem [thread:$0]  %s40, 2048, %s42, [#allocation6], 128, 128, 8
    $region9: #{tpu_custom_call.1} parent=1 // pred_fallthru
      _
    // Predicated region
    $region10: #{tpu_custom_call.1} parent=1 // pred_check
      _
    $region11: #{tpu_custom_call.1} parent=1 // pred_check_branch
      %49 = sbr.rel (0) target = $region13
    $region12: #{tpu_custom_call.1} parent=1 // pred_region
      %51 = dma.done [#allocation3], 2048
    $region13: #{tpu_custom_call.1} parent=1 // pred_fallthru
      _
    // Predicated region
    $region14: #{tpu_custom_call.1} parent=1 // pred_check
      _
    $region15: #{tpu_custom_call.1} parent=1 // pred_check_branch
      %53 = sbr.rel (0) target = $region17
    $region16: #{tpu_custom_call.1} parent=1 // pred_region
      %55 = dma.done [#allocation6], 2048
    $region17: #{tpu_custom_call.1} parent=1 // pred_fallthru
      _
    %s56 = sadd.s32 0, 0
    %s57 = smul.u32 16, %s56
    %s58 = ssub.s32 2, %s57
    %s59 = smul.u32 8, %s58
    %p60 = scmp.eq.s32.totalorder 0, 0
    %p61 = scmp.eq.s32.totalorder 0, 0
    %p62 = pnand %p60, %p61
    %p63 = pneg %p62
    // Predicated region
    $region18: #{tpu_custom_call.1} parent=1 // pred_check
      _
    $region19: #{tpu_custom_call.1} parent=1 // pred_check_branch
      %65 = sbr.rel (%p62) target = $region21
    $region20: #{tpu_custom_call.1} parent=1 // pred_region
      %66 = vst [vmem:[#allocation7] sm:$0x1] 0.0
      %67 = vst [vmem:[#allocation8] sm:$0x1] 0.0
    $region21: #{tpu_custom_call.1} parent=1 // pred_fallthru
      _
    %s68 = sadd.s32 0, 0
    %s69 = smul.u32 %s68, 128
    %s70 = smul.u32 0, 128
    %v71 = vld [vmem:[#allocation2] sm:$0xff]
    %v72 = vld [vmem:[#allocation2 + $0x8] sm:$0xff]
    %v73 = vld [vmem:[#allocation2 + $0x10] sm:$0xff]
    %v74 = vld [vmem:[#allocation2 + $0x18] sm:$0xff]
    %v75 = vld [vmem:[#allocation2 + $0x20] sm:$0xff]
    %v76 = vld [vmem:[#allocation2 + $0x28] sm:$0xff]
    %v77 = vld [vmem:[#allocation2 + $0x30] sm:$0xff]
    %v78 = vld [vmem:[#allocation2 + $0x38] sm:$0xff]
    %v79 = vld [vmem:[#allocation2 + $0x40] sm:$0xff]
    %v80 = vld [vmem:[#allocation2 + $0x48] sm:$0xff]
    %v81 = vld [vmem:[#allocation2 + $0x50] sm:$0xff]
    %v82 = vld [vmem:[#allocation2 + $0x58] sm:$0xff]
    %v83 = vld [vmem:[#allocation2 + $0x60] sm:$0xff]
    %v84 = vld [vmem:[#allocation2 + $0x68] sm:$0xff]
    %v85 = vld [vmem:[#allocation2 + $0x70] sm:$0xff]
    %v86 = vld [vmem:[#allocation2 + $0x78] sm:$0xff]
    %v87 = vlaneseq
    %v88 = vand.u32 %v87, 127
    %s89 = ssub.s32 16, %s70
    %v90 = vstv %s89
    %vm91 = vcmp.lt.s32.totalorder %v88, %v90
    %v92 = vsel %vm91, 1, 0
    %vm93 = vcmp.eq.s32.totalorder %v92, 1
    %v94 = vsel %vm93, %v71, 0.0
    %v95 = vsel %vm93, %v72, 0.0
    %v96 = vsel %vm93, %v73, 0.0
    %v97 = vsel %vm93, %v74, 0.0
    %v98 = vsel %vm93, %v75, 0.0
    %v99 = vsel %vm93, %v76, 0.0
    %v100 = vsel %vm93, %v77, 0.0
    %v101 = vsel %vm93, %v78, 0.0
    %v102 = vsel %vm93, %v79, 0.0
    %v103 = vsel %vm93, %v80, 0.0
    %v104 = vsel %vm93, %v81, 0.0
    %v105 = vsel %vm93, %v82, 0.0
    %v106 = vsel %vm93, %v83, 0.0
    %v107 = vsel %vm93, %v84, 0.0
    %v108 = vsel %vm93, %v85, 0.0
    %v109 = vsel %vm93, %v86, 0.0
    %s110 = scalar_lea.vmem [#allocation5], %s70
    %v111 = vld [vmem:[%s110] sm:$0xff]
    %v112 = vld [vmem:[%s110 + $0x8] sm:$0xff]
    %v113 = vld [vmem:[%s110 + $0x10] sm:$0xff]
    %v114 = vld [vmem:[%s110 + $0x18] sm:$0xff]
    %v115 = vld [vmem:[%s110 + $0x20] sm:$0xff]
    %v116 = vld [vmem:[%s110 + $0x28] sm:$0xff]
    %v117 = vld [vmem:[%s110 + $0x30] sm:$0xff]
    %v118 = vld [vmem:[%s110 + $0x38] sm:$0xff]
    %v119 = vld [vmem:[%s110 + $0x40] sm:$0xff]
    %v120 = vld [vmem:[%s110 + $0x48] sm:$0xff]
    %v121 = vld [vmem:[%s110 + $0x50] sm:$0xff]
    %v122 = vld [vmem:[%s110 + $0x58] sm:$0xff]
    %v123 = vld [vmem:[%s110 + $0x60] sm:$0xff]
    %v124 = vld [vmem:[%s110 + $0x68] sm:$0xff]
    %v125 = vld [vmem:[%s110 + $0x70] sm:$0xff]
    %v126 = vld [vmem:[%s110 + $0x78] sm:$0xff]
    %127 = vmatpush.msra.mxu0 %v126
    %128 = vmatpush.msra.mxu0 %v125
    %129 = vmatpush.msra.mxu0 %v124
    %130 = vmatpush.msra.mxu0 %v123
    %131 = vmatpush.msra.mxu0 %v122
    %132 = vmatpush.msra.mxu0 %v121
    %133 = vmatpush.msra.mxu0 %v120
    %134 = vmatpush.msra.mxu0 %v119
    %135 = vmatpush.msra.mxu0 %v118
    %136 = vmatpush.msra.mxu0 %v117
    %137 = vmatpush.msra.mxu0 %v116
    %138 = vmatpush.msra.mxu0 %v115
    %139 = vmatpush.msra.mxu0 %v114
    %140 = vmatpush.msra.mxu0 %v113
    %141 = vmatpush.msra.mxu0 %v112
    %142 = vmatpush.msra.mxu0 %v111
    %143 = vmatmul.f32.gmra.mxu0 %v94
    %v144 = vpop.f32.mrf.mxu0
    %v145 = vadd.f32 0.0, %v144
    %146 = vmatmul.f32.gmra.mxu0 %v95
    %v147 = vpop.f32.mrf.mxu0
    %v148 = vadd.f32 0.0, %v147
    %149 = vmatmul.f32.gmra.mxu0 %v96
    %v150 = vpop.f32.mrf.mxu0
    %v151 = vadd.f32 0.0, %v150
    %152 = vmatmul.f32.gmra.mxu0 %v97
    %v153 = vpop.f32.mrf.mxu0
    %v154 = vadd.f32 0.0, %v153
    %155 = vmatmul.f32.gmra.mxu0 %v98
    %v156 = vpop.f32.mrf.mxu0
    %v157 = vadd.f32 0.0, %v156
    %158 = vmatmul.f32.gmra.mxu0 %v99
    %v159 = vpop.f32.mrf.mxu0
    %v160 = vadd.f32 0.0, %v159
    %161 = vmatmul.f32.gmra.mxu0 %v100
    %v162 = vpop.f32.mrf.mxu0
    %v163 = vadd.f32 0.0, %v162
    %164 = vmatmul.f32.gmra.mxu0 %v101
    %v165 = vpop.f32.mrf.mxu0
    %v166 = vadd.f32 0.0, %v165
    %167 = vmatmul.f32.gmra.mxu0 %v102
    %v168 = vpop.f32.mrf.mxu0
    %v169 = vadd.f32 0.0, %v168
    %170 = vmatmul.f32.gmra.mxu0 %v103
    %v171 = vpop.f32.mrf.mxu0
    %v172 = vadd.f32 0.0, %v171
    %173 = vmatmul.f32.gmra.mxu0 %v104
    %v174 = vpop.f32.mrf.mxu0
    %v175 = vadd.f32 0.0, %v174
    %176 = vmatmul.f32.gmra.mxu0 %v105
    %v177 = vpop.f32.mrf.mxu0
    %v178 = vadd.f32 0.0, %v177
    %179 = vmatmul.f32.gmra.mxu0 %v106
    %v180 = vpop.f32.mrf.mxu0
    %v181 = vadd.f32 0.0, %v180
    %182 = vmatmul.f32.gmra.mxu0 %v107
    %v183 = vpop.f32.mrf.mxu0
    %v184 = vadd.f32 0.0, %v183
    %185 = vmatmul.f32.gmra.mxu0 %v108
    %v186 = vpop.f32.mrf.mxu0
    %v187 = vadd.f32 0.0, %v186
    %188 = vmatmul.f32.gmra.mxu0 %v109
    %v189 = vpop.f32.mrf.mxu0
    %v190 = vadd.f32 0.0, %v189
    %191 = vdwg.mxu0
    %v192 = vlaneseq
    %v193 = vshrl.u32 %v192, 7
    %v194 = vadd.s32 %v193, 8
    %v195 = vadd.s32 %v193, 16
    %v196 = vadd.s32 %v193, 24
    %v197 = vadd.s32 %v193, 32
    %v198 = vadd.s32 %v193, 40
    %v199 = vadd.s32 %v193, 48
    %v200 = vadd.s32 %v193, 56
    %v201 = vadd.s32 %v193, 64
    %v202 = vadd.s32 %v193, 72
    %v203 = vadd.s32 %v193, 80
    %v204 = vadd.s32 %v193, 88
    %v205 = vadd.s32 %v193, 96
    %v206 = vadd.s32 %v193, 104
    %v207 = vadd.s32 %v193, 112
    %v208 = vadd.s32 %v193, 120
    %s209 = ssub.s32 16, %s69
    %v210 = vstv %s209
    %vm211 = vcmp.lt.s32.totalorder %v193, %v210
    %vm212 = vcmp.lt.s32.totalorder %v194, %v210
    %vm213 = vcmp.lt.s32.totalorder %v195, %v210
    %vm214 = vcmp.lt.s32.totalorder %v196, %v210
    %vm215 = vcmp.lt.s32.totalorder %v197, %v210
    %vm216 = vcmp.lt.s32.totalorder %v198, %v210
    %vm217 = vcmp.lt.s32.totalorder %v199, %v210
    %vm218 = vcmp.lt.s32.totalorder %v200, %v210
    %vm219 = vcmp.lt.s32.totalorder %v201, %v210
    %vm220 = vcmp.lt.s32.totalorder %v202, %v210
    %vm221 = vcmp.lt.s32.totalorder %v203, %v210
    %vm222 = vcmp.lt.s32.totalorder %v204, %v210
    %vm223 = vcmp.lt.s32.totalorder %v205, %v210
    %vm224 = vcmp.lt.s32.totalorder %v206, %v210
    %vm225 = vcmp.lt.s32.totalorder %v207, %v210
    %vm226 = vcmp.lt.s32.totalorder %v208, %v210
    %v227 = vsel %vm211, 1, 0
    %v228 = vsel %vm212, 1, 0
    %v229 = vsel %vm213, 1, 0
    %v230 = vsel %vm214, 1, 0
    %v231 = vsel %vm215, 1, 0
    %v232 = vsel %vm216, 1, 0
    %v233 = vsel %vm217, 1, 0
    %v234 = vsel %vm218, 1, 0
    %v235 = vsel %vm219, 1, 0
    %v236 = vsel %vm220, 1, 0
    %v237 = vsel %vm221, 1, 0
    %v238 = vsel %vm222, 1, 0
    %v239 = vsel %vm223, 1, 0
    %v240 = vsel %vm224, 1, 0
    %v241 = vsel %vm225, 1, 0
    %v242 = vsel %vm226, 1, 0
    %vm243 = vcmp.eq.s32.totalorder %v227, 1
    %vm244 = vcmp.eq.s32.totalorder %v228, 1
    %vm245 = vcmp.eq.s32.totalorder %v229, 1
    %vm246 = vcmp.eq.s32.totalorder %v230, 1
    %vm247 = vcmp.eq.s32.totalorder %v231, 1
    %vm248 = vcmp.eq.s32.totalorder %v232, 1
    %vm249 = vcmp.eq.s32.totalorder %v233, 1
    %vm250 = vcmp.eq.s32.totalorder %v234, 1
    %vm251 = vcmp.eq.s32.totalorder %v235, 1
    %vm252 = vcmp.eq.s32.totalorder %v236, 1
    %vm253 = vcmp.eq.s32.totalorder %v237, 1
    %vm254 = vcmp.eq.s32.totalorder %v238, 1
    %vm255 = vcmp.eq.s32.totalorder %v239, 1
    %vm256 = vcmp.eq.s32.totalorder %v240, 1
    %vm257 = vcmp.eq.s32.totalorder %v241, 1
    %vm258 = vcmp.eq.s32.totalorder %v242, 1
    %v259 = vsel %vm243, %v145, 0.0
    %v260 = vsel %vm244, %v148, 0.0
    %v261 = vsel %vm245, %v151, 0.0
    %v262 = vsel %vm246, %v154, 0.0
    %v263 = vsel %vm247, %v157, 0.0
    %v264 = vsel %vm248, %v160, 0.0
    %v265 = vsel %vm249, %v163, 0.0
    %v266 = vsel %vm250, %v166, 0.0
    %v267 = vsel %vm251, %v169, 0.0
    %v268 = vsel %vm252, %v172, 0.0
    %v269 = vsel %vm253, %v175, 0.0
    %v270 = vsel %vm254, %v178, 0.0
    %v271 = vsel %vm255, %v181, 0.0
    %v272 = vsel %vm256, %v184, 0.0
    %v273 = vsel %vm257, %v187, 0.0
    %v274 = vsel %vm258, %v190, 0.0
    %s275 = scalar_lea.vmem [#allocation5], %s69
    %v276 = vld [vmem:[%s275] sm:$0xff]
    %v277 = vld [vmem:[%s275 + $0x8] sm:$0xff]
    %v278 = vld [vmem:[%s275 + $0x10] sm:$0xff]
    %v279 = vld [vmem:[%s275 + $0x18] sm:$0xff]
    %v280 = vld [vmem:[%s275 + $0x20] sm:$0xff]
    %v281 = vld [vmem:[%s275 + $0x28] sm:$0xff]
    %v282 = vld [vmem:[%s275 + $0x30] sm:$0xff]
    %v283 = vld [vmem:[%s275 + $0x38] sm:$0xff]
    %v284 = vld [vmem:[%s275 + $0x40] sm:$0xff]
    %v285 = vld [vmem:[%s275 + $0x48] sm:$0xff]
    %v286 = vld [vmem:[%s275 + $0x50] sm:$0xff]
    %v287 = vld [vmem:[%s275 + $0x58] sm:$0xff]
    %v288 = vld [vmem:[%s275 + $0x60] sm:$0xff]
    %v289 = vld [vmem:[%s275 + $0x68] sm:$0xff]
    %v290 = vld [vmem:[%s275 + $0x70] sm:$0xff]
    %v291 = vld [vmem:[%s275 + $0x78] sm:$0xff]
    %v292 = vld [vmem:[#allocation7] sm:$0x1]
    %294 = vset.pattern.permute.xlu0 4
    %295 = vperm.xlu0 %294, %v259
    %v296 = vpop.permute.xlu0 %295
    %299 = vset.pattern.permute.xlu0 4
    %300 = vperm.xlu0 %299, %v260
    %v301 = vpop.permute.xlu0 %300
    %304 = vset.pattern.permute.xlu0 4
    %305 = vperm.xlu0 %304, %v261
    %v306 = vpop.permute.xlu0 %305
    %309 = vset.pattern.permute.xlu0 4
    %310 = vperm.xlu0 %309, %v262
    %v311 = vpop.permute.xlu0 %310
    %314 = vset.pattern.permute.xlu0 4
    %315 = vperm.xlu0 %314, %v263
    %v316 = vpop.permute.xlu0 %315
    %319 = vset.pattern.permute.xlu0 4
    %320 = vperm.xlu0 %319, %v264
    %v321 = vpop.permute.xlu0 %320
    %324 = vset.pattern.permute.xlu0 4
    %325 = vperm.xlu0 %324, %v265
    %v326 = vpop.permute.xlu0 %325
    %329 = vset.pattern.permute.xlu0 4
    %330 = vperm.xlu0 %329, %v266
    %v331 = vpop.permute.xlu0 %330
    %334 = vset.pattern.permute.xlu0 4
    %335 = vperm.xlu0 %334, %v267
    %v336 = vpop.permute.xlu0 %335
    %339 = vset.pattern.permute.xlu0 4
    %340 = vperm.xlu0 %339, %v268
    %v341 = vpop.permute.xlu0 %340
    %344 = vset.pattern.permute.xlu0 4
    %345 = vperm.xlu0 %344, %v269
    %v346 = vpop.permute.xlu0 %345
    %349 = vset.pattern.permute.xlu0 4
    %350 = vperm.xlu0 %349, %v270
    %v351 = vpop.permute.xlu0 %350
    %354 = vset.pattern.permute.xlu0 4
    %355 = vperm.xlu0 %354, %v271
    %v356 = vpop.permute.xlu0 %355
    %359 = vset.pattern.permute.xlu0 4
    %360 = vperm.xlu0 %359, %v272
    %v361 = vpop.permute.xlu0 %360
    %364 = vset.pattern.permute.xlu0 4
    %365 = vperm.xlu0 %364, %v273
    %v366 = vpop.permute.xlu0 %365
    %369 = vset.pattern.permute.xlu0 4
    %370 = vperm.xlu0 %369, %v274
    %v371 = vpop.permute.xlu0 %370
    %v373 = vmul.f32 %v276, %v296
    %v374 = vmul.f32 %v277, %v301
    %v375 = vmul.f32 %v278, %v306
    %v376 = vmul.f32 %v279, %v311
    %v377 = vmul.f32 %v280, %v316
    %v378 = vmul.f32 %v281, %v321
    %v379 = vmul.f32 %v282, %v326
    %v380 = vmul.f32 %v283, %v331
    %v381 = vmul.f32 %v284, %v336
    %v382 = vmul.f32 %v285, %v341
    %v383 = vmul.f32 %v286, %v346
    %v384 = vmul.f32 %v287, %v351
    %v385 = vmul.f32 %v288, %v356
    %v386 = vmul.f32 %v289, %v361
    %v387 = vmul.f32 %v290, %v366
    %v388 = vmul.f32 %v291, %v371
    %v389 = vadd.f32 %v373, %v374
    %v390 = vadd.f32 %v389, %v375
    %v391 = vadd.f32 %v390, %v376
    %v392 = vadd.f32 %v391, %v377
    %v393 = vadd.f32 %v392, %v378
    %v394 = vadd.f32 %v393, %v379
    %v395 = vadd.f32 %v394, %v380
    %v396 = vadd.f32 %v395, %v381
    %v397 = vadd.f32 %v396, %v382
    %v398 = vadd.f32 %v397, %v383
    %v399 = vadd.f32 %v398, %v384
    %v400 = vadd.f32 %v399, %v385
    %v401 = vadd.f32 %v400, %v386
    %v402 = vadd.f32 %v401, %v387
    %v403 = vadd.f32 %v402, %v388
    %v404 = vrot.slane %v403, 4
    %v405 = vadd.f32 %v403, %v404
    %v406 = vrot.slane %v405, 2
    %v407 = vadd.f32 %v405, %v406
    %v408 = vrot.slane %v407, 1
    %v409 = vadd.f32 %v407, %v408
    %v410 = vadd.f32 %v292, %v409
    %411 = vst [vmem:[#allocation7] sm:$0x1] %v410
    %v412 = vld [vmem:[#allocation8] sm:$0x1]
    %v413 = vmul.f32 %v276, %v259
    %v414 = vmul.f32 %v277, %v260
    %v415 = vmul.f32 %v278, %v261
    %v416 = vmul.f32 %v279, %v262
    %v417 = vmul.f32 %v280, %v263
    %v418 = vmul.f32 %v281, %v264
    %v419 = vmul.f32 %v282, %v265
    %v420 = vmul.f32 %v283, %v266
    %v421 = vmul.f32 %v284, %v267
    %v422 = vmul.f32 %v285, %v268
    %v423 = vmul.f32 %v286, %v269
    %v424 = vmul.f32 %v287, %v270
    %v425 = vmul.f32 %v288, %v271
    %v426 = vmul.f32 %v289, %v272
    %v427 = vmul.f32 %v290, %v273
    %v428 = vmul.f32 %v291, %v274
    %v429 = vadd.f32 %v413, %v414
    %v430 = vadd.f32 %v429, %v415
    %v431 = vadd.f32 %v430, %v416
    %v432 = vadd.f32 %v431, %v417
    %v433 = vadd.f32 %v432, %v418
    %v434 = vadd.f32 %v433, %v419
    %v435 = vadd.f32 %v434, %v420
    %v436 = vadd.f32 %v435, %v421
    %v437 = vadd.f32 %v436, %v422
    %v438 = vadd.f32 %v437, %v423
    %v439 = vadd.f32 %v438, %v424
    %v440 = vadd.f32 %v439, %v425
    %v441 = vadd.f32 %v440, %v426
    %v442 = vadd.f32 %v441, %v427
    %v443 = vadd.f32 %v442, %v428
    %v444 = vrot.slane %v443, 4
    %v445 = vadd.f32 %v443, %v444
    %v446 = vrot.slane %v445, 2
    %v447 = vadd.f32 %v445, %v446
    %v448 = vrot.slane %v447, 1
    %v449 = vadd.f32 %v447, %v448
    %v450 = vadd.f32 %v412, %v449
    %451 = vst [vmem:[#allocation8] sm:$0x1] %v450
    // Predicated region
    $region22: #{tpu_custom_call.1} parent=1 // pred_check
      _
    $region23: #{tpu_custom_call.1} parent=1 // pred_check_branch
      %453 = sbr.rel (0) target = $region25
    $region24: #{tpu_custom_call.1} parent=1 // pred_region
      %455 = vsyncadd [#allocation4], 0
      %s457 = sshll.u32 [#allocation7], 4
      %s458 = int_to_ptr.vmem [resolvable:$true] %s457
      %s459 = sshll.u32 %s2, 4
      %s460 = int_to_ptr.hbm [resolvable:$true] %s459
      %462 = dma.vmem_to_hbm [thread:$0]  %s458, 16, %s460, [#allocation4]
    $region25: #{tpu_custom_call.1} parent=1 // pred_fallthru
      _
    // Predicated region
    $region26: #{tpu_custom_call.1} parent=1 // pred_check
      _
    $region27: #{tpu_custom_call.1} parent=1 // pred_check_branch
      %464 = sbr.rel (0) target = $region29
    $region28: #{tpu_custom_call.1} parent=1 // pred_region
      %466 = vsyncadd [#allocation9], 0
      %s468 = sshll.u32 [#allocation8], 4
      %s469 = int_to_ptr.vmem [resolvable:$true] %s468
      %s470 = sshll.u32 %s3, 4
      %s471 = int_to_ptr.hbm [resolvable:$true] %s470
      %473 = dma.vmem_to_hbm [thread:$0]  %s469, 16, %s471, [#allocation9]
    $region29: #{tpu_custom_call.1} parent=1 // pred_fallthru
      _
    // Predicated region
    $region30: #{tpu_custom_call.1} parent=1 // pred_check
      _
    $region31: #{tpu_custom_call.1} parent=1 // pred_check_branch
      %475 = sbr.rel (0) target = $region33
    $region32: #{tpu_custom_call.1} parent=1 // pred_region
      %477 = dma.done [#allocation4], 16
    $region33: #{tpu_custom_call.1} parent=1 // pred_fallthru
      _
    // Predicated region
    $region34: #{tpu_custom_call.1} parent=1 // pred_check
      _
    $region35: #{tpu_custom_call.1} parent=1 // pred_check_branch
      %479 = sbr.rel (0) target = $region37
    $region36: #{tpu_custom_call.1} parent=1 // pred_region
      %481 = dma.done [#allocation9], 16
    $region37: #{tpu_custom_call.1} parent=1 // pred_fallthru
      _
    %482 = vsyncpa [#allocation3], 1
    %483 = vsyncpa [#allocation6], 1
    %484 = vsyncpa [#allocation4], 1
    %485 = vsyncpa [#allocation9], 1

</llo_original>
